<compile_context>
chip_gen: v7x
topology: tpu7x:2x2x1
jax: 0.10.0
libtpu: 0.0.40
codegen_flags: <defaults>
</compile_context>

<pallas_src>
import functools

import numpy as np
import jax
import jax.numpy as jnp
from jax import lax
from jax.experimental import pallas as pl
from jax.experimental.pallas import tpu as pltpu  # noqa: F401  (kept for scaling TODO)


# ----------------------------------------------------------------------------
# Trace-time helpers (static shapes -> plain numpy)
# ----------------------------------------------------------------------------
def interp_matrix_np(out_size, in_size):
    """PyTorch F.interpolate(mode='bilinear', align_corners=True) 1-D weights."""
    m = np.zeros((out_size, in_size), np.float32)
    if out_size == 1:
        m[0, 0] = 1.0
        return m
    scale = (in_size - 1) / (out_size - 1)
    for o in range(out_size):
        src = o * scale
        i0 = min(int(np.floor(src)), in_size - 1)
        i1 = min(i0 + 1, in_size - 1)
        w1 = src - i0
        m[o, i0] += 1.0 - w1
        m[o, i1] += w1
    return m


def _wide_upsample_matrix_np(Hout, Wout, Ho, Wo, H, W):
    """Combined bilinear operator on the 'wide' conv pixel grid.

    Returns M of shape (H*W, Hout*Wout) with
        M[i*W + j, oi*Wout + oj] = WH[oi, i] * WW[oj, j]   for i < Ho, j < Wo
    and zero rows for the wrap-around (invalid) conv columns, so
        upsampled = conv_wide_slab @ M
    ignores the garbage columns automatically.
    """
    wh = interp_matrix_np(Hout, Ho)                     # (Hout, Ho)
    ww = interp_matrix_np(Wout, Wo)                     # (Wout, Wo)
    wh_e = np.zeros((Hout, H), np.float32)
    wh_e[:, :Ho] = wh
    ww_e = np.zeros((Wout, W), np.float32)
    ww_e[:, :Wo] = ww
    return np.kron(wh_e, ww_e).T.astype(np.float32)     # (H*W, Hout*Wout)


def _weight_matrix(w_hwio):
    """(KH,KW,Cin,Cout) -> (Cout, KH*KW*Cin), k ordered (kh, kw, cin)."""
    KH, KW, Cin, Cout = w_hwio.shape
    return jnp.transpose(w_hwio, (3, 0, 1, 2)).reshape(Cout, KH * KW * Cin)


# ----------------------------------------------------------------------------
# Pallas kernels (single invocation, whole operands resident in VMEM)
# ----------------------------------------------------------------------------
def _conv_rows(x_ref, w_ref, b_ref, *, B, KH, KW, W, HW):
    """Wide VALID conv for all batches as a (B*Cout, H*W) f32 slab.

    x_ref: (B, Cin, H*W) f32 -- input, flattened spatial dims (lane-dense).
    w_ref: (Cout, KH*KW*Cin) bf16 -- weight matrix, k ordered (kh, kw, cin).
    b_ref: (Cout, 1) f32 -- bias.

    Column p = i*W + j of the result holds the valid conv output for output
    pixel (i, j) whenever i < H-KH+1 and j < W-KW+1; other columns are
    wrap-around garbage that downstream consumers discard.
    """
    rows = []
    for b in range(B):                                   # static unroll (small B)
        xb = x_ref[b]                                    # (Cin, HW) f32
        xb2 = jnp.concatenate([xb, xb], axis=1)          # (Cin, 2*HW): cyclic view
        taps = []
        for kh in range(KH):
            for kw in range(KW):
                s = kh * W + kw                          # flat shift of this tap
                taps.append(xb2[:, s:s + HW])            # (Cin, HW), wrapped shift
        # Patch slab on the full pixel grid, k ordered (kh, kw, cin) to match w.
        p = jnp.concatenate(taps, axis=0).astype(jnp.bfloat16)   # (K, HW)
        yb = jnp.dot(w_ref[...], p, preferred_element_type=jnp.float32)
        rows.append(yb + b_ref[...])                     # (Cout, HW) f32
    return jnp.concatenate(rows, axis=0)                 # (B*Cout, HW) f32


def conv_kernel(x_ref, w_ref, b_ref, o_ref, *, B, KH, KW, W, HW):
    y = _conv_rows(x_ref, w_ref, b_ref, B=B, KH=KH, KW=KW, W=W, HW=HW)
    o_ref[...] = y.astype(o_ref.dtype)                   # lane-dense (B*Cout, HW)


def conv_upsample_kernel(x_ref, w_ref, b_ref, m_ref, o_ref, *, B, KH, KW, W, HW):
    # Fused im2col + conv + bilinear upsample; nothing leaves VMEM in between.
    y = _conv_rows(x_ref, w_ref, b_ref, B=B, KH=KH, KW=KW, W=W, HW=HW)
    u = jnp.dot(y.astype(jnp.bfloat16), m_ref[...],
                preferred_element_type=jnp.float32)      # (B*Cout, Hout*Wout)
    o_ref[...] = u.astype(o_ref.dtype)


# ----------------------------------------------------------------------------
# Wrappers
# ----------------------------------------------------------------------------
@jax.jit
def conv2d_valid_nchw(x_nchw, w_hwio, bias):
    """conv1 only (upscale=False path): NCHW -> NCHW, VALID, stride 1."""
    B, Cin, H, W = x_nchw.shape
    KH, KW, _, Cout = w_hwio.shape
    Ho, Wo = H - KH + 1, W - KW + 1
    HW = H * W

    x_flat = x_nchw.reshape(B, Cin, HW)
    wmat = _weight_matrix(w_hwio).astype(jnp.bfloat16)
    b2 = bias.reshape(Cout, 1).astype(jnp.float32)

    kernel = functools.partial(conv_kernel, B=B, KH=KH, KW=KW, W=W, HW=HW)
    y = pl.pallas_call(
        kernel,
        out_shape=jax.ShapeDtypeStruct((B * Cout, HW), x_nchw.dtype),
    )(x_flat, wmat, b2)
    # Keep only the valid (Ho, Wo) window of the wide pixel grid.
    return y.reshape(B, Cout, H, W)[:, :, :Ho, :Wo]


@functools.partial(jax.jit, static_argnames=("out_hw",))
def conv2d_valid_upsample_nchw(x_nchw, w_hwio, bias, out_hw):
    """Fused conv1 + bilinear upsample (align_corners=True) to out_hw."""
    B, Cin, H, W = x_nchw.shape
    KH, KW, _, Cout = w_hwio.shape
    Ho, Wo = H - KH + 1, W - KW + 1
    HW = H * W
    Hout, Wout = int(out_hw[0]), int(out_hw[1])

    x_flat = x_nchw.reshape(B, Cin, HW)
    wmat = _weight_matrix(w_hwio).astype(jnp.bfloat16)
    b2 = bias.reshape(Cout, 1).astype(jnp.float32)
    m = jnp.asarray(_wide_upsample_matrix_np(Hout, Wout, Ho, Wo, H, W),
                    dtype=jnp.bfloat16)                  # (HW, Hout*Wout)

    kernel = functools.partial(conv_upsample_kernel,
                               B=B, KH=KH, KW=KW, W=W, HW=HW)
    u = pl.pallas_call(
        kernel,
        out_shape=jax.ShapeDtypeStruct((B * Cout, Hout * Wout), x_nchw.dtype),
    )(x_flat, wmat, b2, m)
    return u.reshape(B, Cout, Hout, Wout)


# ----------------------------------------------------------------------------
# HookBasedFeatureExtractor equivalent
# ----------------------------------------------------------------------------
class HookBasedFeatureExtractorPallas:
    """Captures the input(s) and output of the hooked layer ('conv1') of a
    synthetic submodule, optionally bilinearly upscaling the output to x's
    spatial size, and returns (inputs, outputs) -- matching the torch module's
    forward semantics."""

    def __init__(self, params, layername="conv1", upscale=False):
        self.params = params
        self.layername = layername
        self.upscale = upscale
        self.inputs = None
        self.inputs_size = None
        self.outputs = None
        self.outputs_size = None

    def forward(self, x_nchw):
        w_hwio = self.params["conv1_w_hwio"]   # (KH, KW, Cin, Cout)
        bias = self.params["conv1_b"]          # (Cout,)
        B, Cin, H, W = x_nchw.shape
        KH, KW, _, Cout = w_hwio.shape
        Ho, Wo = H - KH + 1, W - KW + 1

        # Forward hook on 'conv1': hook input `i` is the tuple (x,) -> list,
        # hook output `o` is conv1(x); outputs_size records the hooked-layer
        # output size (torch's rescale does not update it).
        self.inputs = [x_nchw]
        self.inputs_size = [x_nchw.shape]
        self.outputs_size = (B, Cout, Ho, Wo)

        if self.upscale:
            # Intended semantics of rescale_output_array (the original has a
            # `.data()` typo): F.interpolate(size=x.shape[2:], mode='bilinear',
            # align_corners=True), fused with the conv in one pallas_call.
            self.outputs = conv2d_valid_upsample_nchw(
                x_nchw, w_hwio, bias, (int(H), int(W)))
        else:
            self.outputs = conv2d_valid_nchw(x_nchw, w_hwio, bias)

        # TODO(synk): the remaining submodule layers (relu/conv2) run in the
        # torch version but their results are discarded by the extractor; they
        # are skipped here.
        return (self.inputs, self.outputs)

    __call__ = forward


# ----------------------------------------------------------------------------
# Demo / correctness check
# ----------------------------------------------------------------------------
if __name__ == "__main__":
    key = jax.random.PRNGKey(0)
    kx, kw, kb = jax.random.split(key, 3)

    B, Cin, H, W = 2, 4, 16, 16
    Cout, KH, KW = 8, 3, 3

    x = jax.random.normal(kx, (B, Cin, H, W), jnp.float32)          # NCHW input
    w_hwio = 0.1 * jax.random.normal(kw, (KH, KW, Cin, Cout), jnp.float32)
    bias = 0.1 * jax.random.normal(kb, (Cout,), jnp.float32)
    params = {"conv1_w_hwio": w_hwio, "conv1_b": bias}

    extractor = HookBasedFeatureExtractorPallas(params, "conv1", upscale=True)
    inputs, outputs = extractor(x)
    jax.block_until_ready(outputs)

    # Pure-JAX f32 reference for validation.
    w_oihw = jnp.transpose(w_hwio, (3, 2, 0, 1))
    ref_conv = lax.conv_general_dilated(
        x, w_oihw, window_strides=(1, 1), padding="VALID",
        dimension_numbers=("NCHW", "OIHW", "NCHW"),
    ) + bias.reshape(1, Cout, 1, 1)
    wh = jnp.asarray(interp_matrix_np(H, H - KH + 1))
    ww = jnp.asarray(interp_matrix_np(W, W - KW + 1))
    ref_up = jnp.einsum("oh,pw,bchw->bcop", wh, ww, ref_conv)

    assert inputs[0].shape == (B, Cin, H, W)
    assert outputs.shape == (B, Cout, H, W)
    np.testing.assert_allclose(np.asarray(inputs[0]), np.asarray(x),
                               rtol=1e-5, atol=1e-5)
    # bf16 matmul operands (f32 accumulate) -> looser tolerance than pure f32.
    np.testing.assert_allclose(np.asarray(outputs), np.asarray(ref_up),
                               rtol=2e-2, atol=2e-2)

    # Also check the non-upscaled hooked-layer output path.
    extractor2 = HookBasedFeatureExtractorPallas(params, "conv1", upscale=False)
    _, out2 = extractor2(x)
    jax.block_until_ready(out2)
    assert out2.shape == (B, Cout, H - KH + 1, W - KW + 1)
    np.testing.assert_allclose(np.asarray(out2), np.asarray(ref_conv),
                               rtol=2e-2, atol=2e-2)

    print("KERNEL_OK")
</pallas_src>

<mosaic_0001>
module attributes {stable_mosaic.version = 11 : i64} {
  func.func @conv_upsample_kernel(%arg0: memref<2x4x256xf32, #tpu.memory_space<vmem>>, %arg1: memref<8x36xbf16, #tpu.memory_space<vmem>>, %arg2: memref<8x1xf32, #tpu.memory_space<vmem>>, %arg3: memref<256x256xbf16, #tpu.memory_space<vmem>>, %arg4: memref<16x256xf32, #tpu.memory_space<vmem>>) attributes {dimension_semantics = [], scalar_prefetch = 0 : i64, scratch_operands = 0 : i64, tpu.core_type = #tpu.core_type<tc>} {
    %c0 = arith.constant 0 : index
    %c0_0 = arith.constant 0 : index
    %c0_1 = arith.constant 0 : index
    %0 = vector.load %arg0[%c0, %c0_0, %c0_1] : memref<2x4x256xf32, #tpu.memory_space<vmem>>, vector<1x4x256xf32>
    %1 = vector.shape_cast %0 : vector<1x4x256xf32> to vector<4x256xf32>
    %2 = tpu.concatenate %1, %1 in 1 : vector<4x256xf32>, vector<4x256xf32> -> vector<4x512xf32>
    %3 = vector.extract_strided_slice %2 {offsets = [0, 0], sizes = [4, 256], strides = [1, 1]} : vector<4x512xf32> to vector<4x256xf32>
    %4 = vector.extract_strided_slice %2 {offsets = [0, 1], sizes = [4, 256], strides = [1, 1]} : vector<4x512xf32> to vector<4x256xf32>
    %5 = vector.extract_strided_slice %2 {offsets = [0, 2], sizes = [4, 256], strides = [1, 1]} : vector<4x512xf32> to vector<4x256xf32>
    %6 = vector.extract_strided_slice %2 {offsets = [0, 16], sizes = [4, 256], strides = [1, 1]} : vector<4x512xf32> to vector<4x256xf32>
    %7 = vector.extract_strided_slice %2 {offsets = [0, 17], sizes = [4, 256], strides = [1, 1]} : vector<4x512xf32> to vector<4x256xf32>
    %8 = vector.extract_strided_slice %2 {offsets = [0, 18], sizes = [4, 256], strides = [1, 1]} : vector<4x512xf32> to vector<4x256xf32>
    %9 = vector.extract_strided_slice %2 {offsets = [0, 32], sizes = [4, 256], strides = [1, 1]} : vector<4x512xf32> to vector<4x256xf32>
    %10 = vector.extract_strided_slice %2 {offsets = [0, 33], sizes = [4, 256], strides = [1, 1]} : vector<4x512xf32> to vector<4x256xf32>
    %11 = vector.extract_strided_slice %2 {offsets = [0, 34], sizes = [4, 256], strides = [1, 1]} : vector<4x512xf32> to vector<4x256xf32>
    %12 = tpu.concatenate %3, %4, %5, %6, %7, %8, %9, %10, %11 in 0 : vector<4x256xf32>, vector<4x256xf32>, vector<4x256xf32>, vector<4x256xf32>, vector<4x256xf32>, vector<4x256xf32>, vector<4x256xf32>, vector<4x256xf32>, vector<4x256xf32> -> vector<36x256xf32>
    %13 = arith.truncf %12 : vector<36x256xf32> to vector<36x256xbf16>
    %c0_2 = arith.constant 0 : index
    %c0_3 = arith.constant 0 : index
    %14 = vector.load %arg1[%c0_2, %c0_3] : memref<8x36xbf16, #tpu.memory_space<vmem>>, vector<8x36xbf16>
    %cst = arith.constant dense<0.000000e+00> : vector<8x256xf32>
    %15 = tpu.matmul %14, %13, %cst {dimension_numbers = #tpu.dot_dimension_numbers<[1], [0], [0], [1], [0, 0, 1, 1], [], []>} : vector<8x36xbf16>, vector<36x256xbf16>, vector<8x256xf32> -> vector<8x256xf32>
    %c0_4 = arith.constant 0 : index
    %c0_5 = arith.constant 0 : index
    %16 = vector.load %arg2[%c0_4, %c0_5] : memref<8x1xf32, #tpu.memory_space<vmem>>, vector<8x1xf32>
    %17 = vector.broadcast %16 : vector<8x1xf32> to vector<8x256xf32>
    %18 = arith.addf %15, %17 : vector<8x256xf32>
    %c1 = arith.constant 1 : index
    %c0_6 = arith.constant 0 : index
    %c0_7 = arith.constant 0 : index
    %19 = vector.load %arg0[%c1, %c0_6, %c0_7] : memref<2x4x256xf32, #tpu.memory_space<vmem>>, vector<1x4x256xf32>
    %20 = vector.shape_cast %19 : vector<1x4x256xf32> to vector<4x256xf32>
    %21 = tpu.concatenate %20, %20 in 1 : vector<4x256xf32>, vector<4x256xf32> -> vector<4x512xf32>
    %22 = vector.extract_strided_slice %21 {offsets = [0, 0], sizes = [4, 256], strides = [1, 1]} : vector<4x512xf32> to vector<4x256xf32>
    %23 = vector.extract_strided_slice %21 {offsets = [0, 1], sizes = [4, 256], strides = [1, 1]} : vector<4x512xf32> to vector<4x256xf32>
    %24 = vector.extract_strided_slice %21 {offsets = [0, 2], sizes = [4, 256], strides = [1, 1]} : vector<4x512xf32> to vector<4x256xf32>
    %25 = vector.extract_strided_slice %21 {offsets = [0, 16], sizes = [4, 256], strides = [1, 1]} : vector<4x512xf32> to vector<4x256xf32>
    %26 = vector.extract_strided_slice %21 {offsets = [0, 17], sizes = [4, 256], strides = [1, 1]} : vector<4x512xf32> to vector<4x256xf32>
    %27 = vector.extract_strided_slice %21 {offsets = [0, 18], sizes = [4, 256], strides = [1, 1]} : vector<4x512xf32> to vector<4x256xf32>
    %28 = vector.extract_strided_slice %21 {offsets = [0, 32], sizes = [4, 256], strides = [1, 1]} : vector<4x512xf32> to vector<4x256xf32>
    %29 = vector.extract_strided_slice %21 {offsets = [0, 33], sizes = [4, 256], strides = [1, 1]} : vector<4x512xf32> to vector<4x256xf32>
    %30 = vector.extract_strided_slice %21 {offsets = [0, 34], sizes = [4, 256], strides = [1, 1]} : vector<4x512xf32> to vector<4x256xf32>
    %31 = tpu.concatenate %22, %23, %24, %25, %26, %27, %28, %29, %30 in 0 : vector<4x256xf32>, vector<4x256xf32>, vector<4x256xf32>, vector<4x256xf32>, vector<4x256xf32>, vector<4x256xf32>, vector<4x256xf32>, vector<4x256xf32>, vector<4x256xf32> -> vector<36x256xf32>
    %32 = arith.truncf %31 : vector<36x256xf32> to vector<36x256xbf16>
    %c0_8 = arith.constant 0 : index
    %c0_9 = arith.constant 0 : index
    %33 = vector.load %arg1[%c0_8, %c0_9] : memref<8x36xbf16, #tpu.memory_space<vmem>>, vector<8x36xbf16>
    %cst_10 = arith.constant dense<0.000000e+00> : vector<8x256xf32>
    %34 = tpu.matmul %33, %32, %cst_10 {dimension_numbers = #tpu.dot_dimension_numbers<[1], [0], [0], [1], [0, 0, 1, 1], [], []>} : vector<8x36xbf16>, vector<36x256xbf16>, vector<8x256xf32> -> vector<8x256xf32>
    %c0_11 = arith.constant 0 : index
    %c0_12 = arith.constant 0 : index
    %35 = vector.load %arg2[%c0_11, %c0_12] : memref<8x1xf32, #tpu.memory_space<vmem>>, vector<8x1xf32>
    %36 = vector.broadcast %35 : vector<8x1xf32> to vector<8x256xf32>
    %37 = arith.addf %34, %36 : vector<8x256xf32>
    %38 = tpu.concatenate %18, %37 in 0 : vector<8x256xf32>, vector<8x256xf32> -> vector<16x256xf32>
    %39 = arith.truncf %38 : vector<16x256xf32> to vector<16x256xbf16>
    %c0_13 = arith.constant 0 : index
    %c0_14 = arith.constant 0 : index
    %40 = vector.load %arg3[%c0_13, %c0_14] : memref<256x256xbf16, #tpu.memory_space<vmem>>, vector<256x256xbf16>
    %cst_15 = arith.constant dense<0.000000e+00> : vector<16x256xf32>
    %41 = tpu.matmul %39, %40, %cst_15 {dimension_numbers = #tpu.dot_dimension_numbers<[1], [0], [0], [1], [0, 0, 1, 1], [], []>} : vector<16x256xbf16>, vector<256x256xbf16>, vector<16x256xf32> -> vector<16x256xf32>
    %c0_16 = arith.constant 0 : index
    %c0_17 = arith.constant 0 : index
    %42 = vector.load %arg4[%c0_16, %c0_17] : memref<16x256xf32, #tpu.memory_space<vmem>>, vector<16x256xf32>
    tpu.vector_store %arg4[%c0_16, %c0_17], %41 {strides = array<i32>} : memref<16x256xf32, #tpu.memory_space<vmem>>, vector<16x256xf32>,
    return
  }
}

</mosaic_0001>

<llo_original>
// kernel: conv2d_valid_upsample_nchw.1
$region0: #{conv2d_valid_upsample_nchw.1}
  #allocation0 [shape = 'u32[]', space=smem, size = 0x4, offset = 0x4, fixed_abs, tag = 'smem constant byte address 0x4 - core index']
  #allocation1 [shape = 'u32[144,128]{1,0:T(1,128)}', space=vmem, size = 0x12000, scoped, tag = 'internal scratch']
  %s0 = inlined_call_operand.vmem [shape: f32[2,4,256], index: 0, kind: input, shape index: {}]
  %s1 = inlined_call_operand.vmem [shape: bf16[8,36], index: 1, kind: input, shape index: {}]
  %s2 = inlined_call_operand.vmem [shape: f32[8,1], index: 2, kind: input, shape index: {}]
  %s3 = inlined_call_operand.vmem [shape: bf16[256,256], index: 3, kind: input, shape index: {}]
  %s4 = inlined_call_operand.vmem [shape: f32[16,256], index: 4, kind: output, shape index: {}]
  %s5 = sld [smem:[#allocation0]]
  $region26: #{conv2d_valid_upsample_nchw.1} parent=0
    _
  %s7 = ssub.s32 1, %s5
  %s8 = scalar_select 0, %s7, %s5
  // Predicated region
  $region2: #{conv2d_valid_upsample_nchw.1} parent=0 // pred_check
    _
  $region3: #{conv2d_valid_upsample_nchw.1} parent=0 // pred_check_branch
    %10 = sbr.rel (0) target = $region5
  $region4: #{conv2d_valid_upsample_nchw.1} parent=0 // pred_region
    _
  $region5: #{conv2d_valid_upsample_nchw.1} parent=0 // pred_fallthru
    _
  // Predicated region
  $region6: #{conv2d_valid_upsample_nchw.1} parent=0 // pred_check
    _
  $region7: #{conv2d_valid_upsample_nchw.1} parent=0 // pred_check_branch
    %12 = sbr.rel (0) target = $region9
  $region8: #{conv2d_valid_upsample_nchw.1} parent=0 // pred_region
    _
  $region9: #{conv2d_valid_upsample_nchw.1} parent=0 // pred_fallthru
    _
  // Predicated region
  $region10: #{conv2d_valid_upsample_nchw.1} parent=0 // pred_check
    _
  $region11: #{conv2d_valid_upsample_nchw.1} parent=0 // pred_check_branch
    %14 = sbr.rel (0) target = $region13
  $region12: #{conv2d_valid_upsample_nchw.1} parent=0 // pred_region
    _
  $region13: #{conv2d_valid_upsample_nchw.1} parent=0 // pred_fallthru
    _
  // Predicated region
  $region14: #{conv2d_valid_upsample_nchw.1} parent=0 // pred_check
    _
  $region15: #{conv2d_valid_upsample_nchw.1} parent=0 // pred_check_branch
    %16 = sbr.rel (0) target = $region17
  $region16: #{conv2d_valid_upsample_nchw.1} parent=0 // pred_region
    _
  $region17: #{conv2d_valid_upsample_nchw.1} parent=0 // pred_fallthru
    _
  %v18 = vld [vmem:[%s0] sm:$0xff]
  %v20 = vcombine.high %v18, %v18
  %v22 = vrot.slane %v18, 4
  %v23 = vrot.slane %v20, 4
  %24 = vrot.lane.b32.xlu0 %v22, 127
  %v25 = vpop.permute.xlu0 %24
  %26 = vrot.lane.b32.xlu0 %v23, 127
  %v27 = vpop.permute.xlu0 %26
  %vm28 = vcmask 1039360
  %v29 = vsel %vm28, %v25, %v27
  %v30 = vsel %vm28, %v27, %v25
  %33 = vrot.lane.b32.xlu0 %v18, 126
  %v34 = vpop.permute.xlu0 %33
  %35 = vrot.lane.b32.xlu0 %v20, 126
  %v36 = vpop.permute.xlu0 %35
  %vm37 = vcmask 1031168
  %v38 = vsel %vm37, %v34, %v36
  %v39 = vsel %vm37, %v36, %v34
  %42 = vrot.lane.b32.xlu0 %v22, 112
  %v43 = vpop.permute.xlu0 %42
  %44 = vrot.lane.b32.xlu0 %v23, 112
  %v45 = vpop.permute.xlu0 %44
  %vm46 = vcmask 916480
  %v47 = vsel %vm46, %v43, %v45
  %v48 = vsel %vm46, %v45, %v43
  %51 = vrot.lane.b32.xlu0 %v18, 111
  %v52 = vpop.permute.xlu0 %51
  %53 = vrot.lane.b32.xlu0 %v20, 111
  %v54 = vpop.permute.xlu0 %53
  %vm55 = vcmask 908288
  %v56 = vsel %vm55, %v52, %v54
  %v57 = vsel %vm55, %v54, %v52
  %60 = vrot.lane.b32.xlu0 %v22, 110
  %v61 = vpop.permute.xlu0 %60
  %62 = vrot.lane.b32.xlu0 %v23, 110
  %v63 = vpop.permute.xlu0 %62
  %vm64 = vcmask 900096
  %v65 = vsel %vm64, %v61, %v63
  %v66 = vsel %vm64, %v63, %v61
  %69 = vrot.lane.b32.xlu0 %v18, 96
  %v70 = vpop.permute.xlu0 %69
  %71 = vrot.lane.b32.xlu0 %v20, 96
  %v72 = vpop.permute.xlu0 %71
  %vm73 = vcmask 785408
  %v74 = vsel %vm73, %v70, %v72
  %v75 = vsel %vm73, %v72, %v70
  %78 = vrot.lane.b32.xlu0 %v22, 95
  %v79 = vpop.permute.xlu0 %78
  %80 = vrot.lane.b32.xlu0 %v23, 95
  %v81 = vpop.permute.xlu0 %80
  %vm82 = vcmask 777216
  %v83 = vsel %vm82, %v79, %v81
  %v84 = vsel %vm82, %v81, %v79
  %87 = vrot.lane.b32.xlu0 %v18, 94
  %v88 = vpop.permute.xlu0 %87
  %89 = vrot.lane.b32.xlu0 %v20, 94
  %v90 = vpop.permute.xlu0 %89
  %vm91 = vcmask 769024
  %v92 = vsel %vm91, %v88, %v90
  %v93 = vsel %vm91, %v90, %v88
  %vm96 = vcmask 1043456
  %v97 = vsel %vm96, %v18, %v29
  %v98 = vsel %vm96, %v20, %v30
  %v99 = vsel %vm96, %v38, %v47
  %v100 = vsel %vm96, %v39, %v48
  %v101 = vsel %vm96, %v56, %v65
  %v102 = vsel %vm96, %v57, %v66
  %v103 = vsel %vm96, %v74, %v83
  %v104 = vsel %vm96, %v75, %v84
  %v105 = vpack.c.bf16 %v99, %v97
  %v106 = vpack.c.bf16 %v100, %v98
  %v107 = vpack.c.bf16 %v103, %v101
  %v108 = vpack.c.bf16 %v104, %v102
  %v109 = vpack.c.bf16 %v92, %v92
  %v110 = vpack.c.bf16 %v93, %v93
  %v111 = vld [vmem:[%s1] sm:$0xf]
  %v112 = vld [vmem:[%s2] sm:$0xff]
  %114 = vset.pattern.permute.xlu0 0
  %115 = vperm.xlu0 %114, %v112
  %v116 = vpop.permute.xlu0 %115
  %vm118 = vcmask 293888
  %v120 = vsel %vm118, %v111, 0
  %vm122 = vcmask 1041408
  %v124 = vsel %vm122, %v109, 0
  %v127 = vsel %vm122, %v110, 0
  %129 = vmatprep.subr.bf16.mxu0 %v106
  %130 = vmatpush1.bf16.msra.mxu0 %v105
  %131 = vmatprep.subr.bf16.mxu0 %v108
  %132 = vmatpush1.bf16.msra.mxu0 %v107
  %133 = vmatprep.subr.bf16.mxu0 %v127
  %134 = vmatpush1.bf16.msra.mxu0 %v124
  %135 = vmatprep.subr.bf16.mxu0 0
  %136 = vmatpush1.bf16.msra.mxu0 0
  %137 = vmatprep.subr.bf16.mxu0 0
  %138 = vmatpush1.bf16.msra.mxu0 0
  %139 = vmatprep.subr.bf16.mxu0 0
  %140 = vmatpush1.bf16.msra.mxu0 0
  %141 = vmatprep.subr.bf16.mxu0 0
  %142 = vmatpush1.bf16.msra.mxu0 0
  %143 = vmatprep.subr.bf16.mxu0 0
  %144 = vmatpush1.bf16.msra.mxu0 0
  %145 = vmatprep.subr.bf16.mxu0 0
  %146 = vmatpush1.bf16.msra.mxu0 0
  %147 = vmatprep.subr.bf16.mxu0 0
  %148 = vmatpush1.bf16.msra.mxu0 0
  %149 = vmatprep.subr.bf16.mxu0 0
  %150 = vmatpush1.bf16.msra.mxu0 0
  %151 = vmatprep.subr.bf16.mxu0 0
  %152 = vmatpush1.bf16.msra.mxu0 0
  %153 = vmatprep.subr.bf16.mxu0 0
  %154 = vmatpush1.bf16.msra.mxu0 0
  %155 = vmatprep.subr.bf16.mxu0 0
  %156 = vmatpush1.bf16.msra.mxu0 0
  %157 = vmatprep.subr.bf16.mxu0 0
  %158 = vmatpush1.bf16.msra.mxu0 0
  %159 = vmatprep.subr.bf16.mxu0 0
  %160 = vmatpush1.bf16.msra.mxu0 0
  %161 = vmatprep.mubr.bf16.mxu0 0
  %162 = vmatmul.mubr.bf16.gmra.mrb[0].mxu0 %v120
  %v163 = vpop.f32.mrb[0].mxu0
  %v164 = vadd.f32 %v116, %v163
  %v165 = vpop.f32.mrb[0].mxu0
  %v166 = vadd.f32 %v116, %v165
  %v167 = vpop.f32.mrb[0].mxu0
  %v168 = vpop.f32.mrb[0].mxu0
  %169 = vdwg.mxu0
  %s170 = scalar_lea.vmem %s0, 8
  %v171 = vld [vmem:[%s170] sm:$0xff]
  %v173 = vcombine.high %v171, %v171
  %v175 = vrot.slane %v171, 4
  %v176 = vrot.slane %v173, 4
  %177 = vrot.lane.b32.xlu0 %v175, 127
  %v178 = vpop.permute.xlu0 %177
  %179 = vrot.lane.b32.xlu0 %v176, 127
  %v180 = vpop.permute.xlu0 %179
  %v181 = vsel %vm28, %v178, %v180
  %v182 = vsel %vm28, %v180, %v178
  %185 = vrot.lane.b32.xlu0 %v171, 126
  %v186 = vpop.permute.xlu0 %185
  %187 = vrot.lane.b32.xlu0 %v173, 126
  %v188 = vpop.permute.xlu0 %187
  %v189 = vsel %vm37, %v186, %v188
  %v190 = vsel %vm37, %v188, %v186
  %193 = vrot.lane.b32.xlu0 %v175, 112
  %v194 = vpop.permute.xlu0 %193
  %195 = vrot.lane.b32.xlu0 %v176, 112
  %v196 = vpop.permute.xlu0 %195
  %v197 = vsel %vm46, %v194, %v196
  %v198 = vsel %vm46, %v196, %v194
  %201 = vrot.lane.b32.xlu0 %v171, 111
  %v202 = vpop.permute.xlu0 %201
  %203 = vrot.lane.b32.xlu0 %v173, 111
  %v204 = vpop.permute.xlu0 %203
  %v205 = vsel %vm55, %v202, %v204
  %v206 = vsel %vm55, %v204, %v202
  %209 = vrot.lane.b32.xlu0 %v175, 110
  %v210 = vpop.permute.xlu0 %209
  %211 = vrot.lane.b32.xlu0 %v176, 110
  %v212 = vpop.permute.xlu0 %211
  %v213 = vsel %vm64, %v210, %v212
  %v214 = vsel %vm64, %v212, %v210
  %217 = vrot.lane.b32.xlu0 %v171, 96
  %v218 = vpop.permute.xlu0 %217
  %219 = vrot.lane.b32.xlu0 %v173, 96
  %v220 = vpop.permute.xlu0 %219
  %v221 = vsel %vm73, %v218, %v220
  %v222 = vsel %vm73, %v220, %v218
  %225 = vrot.lane.b32.xlu0 %v175, 95
  %v226 = vpop.permute.xlu0 %225
  %227 = vrot.lane.b32.xlu0 %v176, 95
  %v228 = vpop.permute.xlu0 %227
  %v229 = vsel %vm82, %v226, %v228
  %v230 = vsel %vm82, %v228, %v226
  %233 = vrot.lane.b32.xlu0 %v171, 94
  %v234 = vpop.permute.xlu0 %233
  %235 = vrot.lane.b32.xlu0 %v173, 94
  %v236 = vpop.permute.xlu0 %235
  %v237 = vsel %vm91, %v234, %v236
  %v238 = vsel %vm91, %v236, %v234
  %v241 = vsel %vm96, %v171, %v181
  %v242 = vsel %vm96, %v173, %v182
  %v243 = vsel %vm96, %v189, %v197
  %v244 = vsel %vm96, %v190, %v198
  %v245 = vsel %vm96, %v205, %v213
  %v246 = vsel %vm96, %v206, %v214
  %v247 = vsel %vm96, %v221, %v229
  %v248 = vsel %vm96, %v222, %v230
  %v249 = vpack.c.bf16 %v243, %v241
  %v250 = vpack.c.bf16 %v244, %v242
  %v251 = vpack.c.bf16 %v247, %v245
  %v252 = vpack.c.bf16 %v248, %v246
  %v253 = vpack.c.bf16 %v237, %v237
  %v254 = vpack.c.bf16 %v238, %v238
  %v256 = vsel %vm122, %v253, 0
  %v259 = vsel %vm122, %v254, 0
  %261 = vmatprep.subr.bf16.mxu0 %v250
  %262 = vmatpush1.bf16.msra.mxu0 %v249
  %263 = vmatprep.subr.bf16.mxu0 %v252
  %264 = vmatpush1.bf16.msra.mxu0 %v251
  %265 = vmatprep.subr.bf16.mxu0 %v259
  %266 = vmatpush1.bf16.msra.mxu0 %v256
  %267 = vmatprep.subr.bf16.mxu0 0
  %268 = vmatpush1.bf16.msra.mxu0 0
  %269 = vmatprep.subr.bf16.mxu0 0
  %270 = vmatpush1.bf16.msra.mxu0 0
  %271 = vmatprep.subr.bf16.mxu0 0
  %272 = vmatpush1.bf16.msra.mxu0 0
  %273 = vmatprep.subr.bf16.mxu0 0
  %274 = vmatpush1.bf16.msra.mxu0 0
  %275 = vmatprep.subr.bf16.mxu0 0
  %276 = vmatpush1.bf16.msra.mxu0 0
  %277 = vmatprep.subr.bf16.mxu0 0
  %278 = vmatpush1.bf16.msra.mxu0 0
  %279 = vmatprep.subr.bf16.mxu0 0
  %280 = vmatpush1.bf16.msra.mxu0 0
  %281 = vmatprep.subr.bf16.mxu0 0
  %282 = vmatpush1.bf16.msra.mxu0 0
  %283 = vmatprep.subr.bf16.mxu0 0
  %284 = vmatpush1.bf16.msra.mxu0 0
  %285 = vmatprep.subr.bf16.mxu0 0
  %286 = vmatpush1.bf16.msra.mxu0 0
  %287 = vmatprep.subr.bf16.mxu0 0
  %288 = vmatpush1.bf16.msra.mxu0 0
  %289 = vmatprep.subr.bf16.mxu0 0
  %290 = vmatpush1.bf16.msra.mxu0 0
  %291 = vmatprep.subr.bf16.mxu0 0
  %292 = vmatpush1.bf16.msra.mxu0 0
  %293 = vmatprep.mubr.bf16.mxu0 0
  %294 = vmatmul.mubr.bf16.gmra.mrb[0].mxu0 %v120
  %v295 = vpop.f32.mrb[0].mxu0
  %v296 = vadd.f32 %v116, %v295
  %v297 = vpop.f32.mrb[0].mxu0
  %v298 = vadd.f32 %v116, %v297
  %v299 = vpop.f32.mrb[0].mxu0
  %v300 = vpop.f32.mrb[0].mxu0
  %301 = vdwg.mxu0
  %v302 = vpack.c.bf16 %v296, %v164
  %v303 = vpack.c.bf16 %v298, %v166
  %v304 = vld [vmem:[%s3] sm:$0xff]
  %v305 = vld [vmem:[%s3 + $0x8] sm:$0xff]
  %v306 = vld [vmem:[%s3 + $0x10] sm:$0xff]
  %v307 = vld [vmem:[%s3 + $0x18] sm:$0xff]
  %v308 = vld [vmem:[%s3 + $0x20] sm:$0xff]
  %v309 = vld [vmem:[%s3 + $0x28] sm:$0xff]
  %v310 = vld [vmem:[%s3 + $0x30] sm:$0xff]
  %v311 = vld [vmem:[%s3 + $0x38] sm:$0xff]
  %v312 = vld [vmem:[%s3 + $0x40] sm:$0xff]
  %v313 = vld [vmem:[%s3 + $0x48] sm:$0xff]
  %v314 = vld [vmem:[%s3 + $0x50] sm:$0xff]
  %v315 = vld [vmem:[%s3 + $0x58] sm:$0xff]
  %v316 = vld [vmem:[%s3 + $0x60] sm:$0xff]
  %v317 = vld [vmem:[%s3 + $0x68] sm:$0xff]
  %v318 = vld [vmem:[%s3 + $0x70] sm:$0xff]
  %v319 = vld [vmem:[%s3 + $0x78] sm:$0xff]
  %v320 = vld [vmem:[%s3 + $0x80] sm:$0xff]
  %v321 = vld [vmem:[%s3 + $0x88] sm:$0xff]
  %v322 = vld [vmem:[%s3 + $0x90] sm:$0xff]
  %v323 = vld [vmem:[%s3 + $0x98] sm:$0xff]
  %v324 = vld [vmem:[%s3 + $0xa0] sm:$0xff]
  %v325 = vld [vmem:[%s3 + $0xa8] sm:$0xff]
  %v326 = vld [vmem:[%s3 + $0xb0] sm:$0xff]
  %v327 = vld [vmem:[%s3 + $0xb8] sm:$0xff]
  %v328 = vld [vmem:[%s3 + $0xc0] sm:$0xff]
  %v329 = vld [vmem:[%s3 + $0xc8] sm:$0xff]
  %v330 = vld [vmem:[%s3 + $0xd0] sm:$0xff]
  %v331 = vld [vmem:[%s3 + $0xd8] sm:$0xff]
  %v332 = vld [vmem:[%s3 + $0xe0] sm:$0xff]
  %v333 = vld [vmem:[%s3 + $0xe8] sm:$0xff]
  %v334 = vld [vmem:[%s3 + $0xf0] sm:$0xff]
  %v335 = vld [vmem:[%s3 + $0xf8] sm:$0xff]
  %v368 = vunpack.c.l.b16 %v304
  %v369 = vunpack.c.h.b16 %v304
  %v370 = vunpack.c.l.b16 %v305
  %v371 = vunpack.c.h.b16 %v305
  %v372 = vunpack.c.l.b16 %v306
  %v373 = vunpack.c.h.b16 %v306
  %v374 = vunpack.c.l.b16 %v307
  %v375 = vunpack.c.h.b16 %v307
  %v376 = vunpack.c.l.b16 %v308
  %v377 = vunpack.c.h.b16 %v308
  %v378 = vunpack.c.l.b16 %v309
  %v379 = vunpack.c.h.b16 %v309
  %v380 = vunpack.c.l.b16 %v310
  %v381 = vunpack.c.h.b16 %v310
  %v382 = vunpack.c.l.b16 %v311
  %v383 = vunpack.c.h.b16 %v311
  %v384 = vunpack.c.l.b16 %v312
  %v385 = vunpack.c.h.b16 %v312
  %v386 = vunpack.c.l.b16 %v313
  %v387 = vunpack.c.h.b16 %v313
  %v388 = vunpack.c.l.b16 %v314
  %v389 = vunpack.c.h.b16 %v314
  %v390 = vunpack.c.l.b16 %v315
  %v391 = vunpack.c.h.b16 %v315
  %v392 = vunpack.c.l.b16 %v316
  %v393 = vunpack.c.h.b16 %v316
  %v394 = vunpack.c.l.b16 %v317
  %v395 = vunpack.c.h.b16 %v317
  %v396 = vunpack.c.l.b16 %v318
  %v397 = vunpack.c.h.b16 %v318
  %v398 = vunpack.c.l.b16 %v319
  %v399 = vunpack.c.h.b16 %v319
  %v400 = vunpack.c.l.b16 %v320
  %v401 = vunpack.c.h.b16 %v320
  %v402 = vunpack.c.l.b16 %v321
  %v403 = vunpack.c.h.b16 %v321
  %v404 = vunpack.c.l.b16 %v322
  %v405 = vunpack.c.h.b16 %v322
  %v406 = vunpack.c.l.b16 %v323
  %v407 = vunpack.c.h.b16 %v323
  %v408 = vunpack.c.l.b16 %v324
  %v409 = vunpack.c.h.b16 %v324
  %v410 = vunpack.c.l.b16 %v325
  %v411 = vunpack.c.h.b16 %v325
  %v412 = vunpack.c.l.b16 %v326
  %v413 = vunpack.c.h.b16 %v326
  %v414 = vunpack.c.l.b16 %v327
  %v415 = vunpack.c.h.b16 %v327
  %v416 = vunpack.c.l.b16 %v328
  %v417 = vunpack.c.h.b16 %v328
  %v418 = vunpack.c.l.b16 %v329
  %v419 = vunpack.c.h.b16 %v329
  %v420 = vunpack.c.l.b16 %v330
  %v421 = vunpack.c.h.b16 %v330
  %v422 = vunpack.c.l.b16 %v331
  %v423 = vunpack.c.h.b16 %v331
  %v424 = vunpack.c.l.b16 %v332
  %v425 = vunpack.c.h.b16 %v332
  %v426 = vunpack.c.l.b16 %v333
  %v427 = vunpack.c.h.b16 %v333
  %v428 = vunpack.c.l.b16 %v334
  %v429 = vunpack.c.h.b16 %v334
  %v430 = vunpack.c.l.b16 %v335
  %v431 = vunpack.c.h.b16 %v335
  %v432 = vpack.c.b16 %v370, %v368
  %v433 = vpack.c.b16 %v371, %v369
  %v434 = vpack.c.b16 %v374, %v372
  %v435 = vpack.c.b16 %v375, %v373
  %v436 = vpack.c.b16 %v378, %v376
  %v437 = vpack.c.b16 %v379, %v377
  %v438 = vpack.c.b16 %v382, %v380
  %v439 = vpack.c.b16 %v383, %v381
  %v440 = vpack.c.b16 %v386, %v384
  %v441 = vpack.c.b16 %v387, %v385
  %v442 = vpack.c.b16 %v390, %v388
  %v443 = vpack.c.b16 %v391, %v389
  %v444 = vpack.c.b16 %v394, %v392
  %v445 = vpack.c.b16 %v395, %v393
  %v446 = vpack.c.b16 %v398, %v396
  %v447 = vpack.c.b16 %v399, %v397
  %v448 = vpack.c.b16 %v402, %v400
  %v449 = vpack.c.b16 %v403, %v401
  %v450 = vpack.c.b16 %v406, %v404
  %v451 = vpack.c.b16 %v407, %v405
  %v452 = vpack.c.b16 %v410, %v408
  %v453 = vpack.c.b16 %v411, %v409
  %v454 = vpack.c.b16 %v414, %v412
  %v455 = vpack.c.b16 %v415, %v413
  %v456 = vpack.c.b16 %v418, %v416
  %v457 = vpack.c.b16 %v419, %v417
  %v458 = vpack.c.b16 %v422, %v420
  %v459 = vpack.c.b16 %v423, %v421
  %v460 = vpack.c.b16 %v426, %v424
  %v461 = vpack.c.b16 %v427, %v425
  %v462 = vpack.c.b16 %v430, %v428
  %v463 = vpack.c.b16 %v431, %v429
  %496 = vmatprep.subr.bf16.mxu0 %v433
  %497 = vmatpush1.bf16.msra.mxu0 %v432
  %498 = vmatprep.subr.bf16.mxu0 %v435
  %499 = vmatpush1.bf16.msra.mxu0 %v434
  %500 = vmatprep.subr.bf16.mxu0 %v437
  %501 = vmatpush1.bf16.msra.mxu0 %v436
  %502 = vmatprep.subr.bf16.mxu0 %v439
  %503 = vmatpush1.bf16.msra.mxu0 %v438
  %504 = vmatprep.subr.bf16.mxu0 %v441
  %505 = vmatpush1.bf16.msra.mxu0 %v440
  %506 = vmatprep.subr.bf16.mxu0 %v443
  %507 = vmatpush1.bf16.msra.mxu0 %v442
  %508 = vmatprep.subr.bf16.mxu0 %v445
  %509 = vmatpush1.bf16.msra.mxu0 %v444
  %510 = vmatprep.subr.bf16.mxu0 %v447
  %511 = vmatpush1.bf16.msra.mxu0 %v446
  %512 = vmatprep.subr.bf16.mxu0 %v449
  %513 = vmatpush1.bf16.msra.mxu0 %v448
  %514 = vmatprep.subr.bf16.mxu0 %v451
  %515 = vmatpush1.bf16.msra.mxu0 %v450
  %516 = vmatprep.subr.bf16.mxu0 %v453
  %517 = vmatpush1.bf16.msra.mxu0 %v452
  %518 = vmatprep.subr.bf16.mxu0 %v455
  %519 = vmatpush1.bf16.msra.mxu0 %v454
  %520 = vmatprep.subr.bf16.mxu0 %v457
  %521 = vmatpush1.bf16.msra.mxu0 %v456
  %522 = vmatprep.subr.bf16.mxu0 %v459
  %523 = vmatpush1.bf16.msra.mxu0 %v458
  %524 = vmatprep.subr.bf16.mxu0 %v461
  %525 = vmatpush1.bf16.msra.mxu0 %v460
  %526 = vmatprep.subr.bf16.mxu0 %v463
  %527 = vmatpush1.bf16.msra.mxu0 %v462
  %528 = vmatprep.mubr.bf16.mxu0 %v303
  %529 = vmatmul.mubr.bf16.gmra.mrb[0].mxu0 %v302
  %v530 = vpop.f32.mrb[0].mxu0
  %v531 = vadd.f32 0.0, %v530
  %v532 = vpop.f32.mrb[0].mxu0
  %v533 = vadd.f32 0.0, %v532
  %v534 = vpop.f32.mrb[0].mxu0
  %v535 = vadd.f32 0.0, %v534
  %v536 = vpop.f32.mrb[0].mxu0
  %v537 = vadd.f32 0.0, %v536
  %538 = vdwg.mxu0
  %539 = vst [vmem:[%s4] sm:$0xff] %v531
  %540 = vst [vmem:[%s4 + $0x8] sm:$0xff] %v533
  %541 = vst [vmem:[%s4 + $0x10] sm:$0xff] %v535
  %542 = vst [vmem:[%s4 + $0x18] sm:$0xff] %v537
  // Predicated region
  $region18: #{conv2d_valid_upsample_nchw.1} parent=0 // pred_check
    _
  $region19: #{conv2d_valid_upsample_nchw.1} parent=0 // pred_check_branch
    %544 = sbr.rel (0) target = $region21
  $region20: #{conv2d_valid_upsample_nchw.1} parent=0 // pred_region
    _
  $region21: #{conv2d_valid_upsample_nchw.1} parent=0 // pred_fallthru
    _
  // Predicated region
  $region22: #{conv2d_valid_upsample_nchw.1} parent=0 // pred_check
    _
  $region23: #{conv2d_valid_upsample_nchw.1} parent=0 // pred_check_branch
    %546 = sbr.rel (0) target = $region25
  $region24: #{conv2d_valid_upsample_nchw.1} parent=0 // pred_region
    _
  $region25: #{conv2d_valid_upsample_nchw.1} parent=0 // pred_fallthru
    _

</llo_original>
